<compile_context>
chip_gen: v6e
topology: v6e:2x2x1
jax: 0.10.0
libtpu: 0.0.40
codegen_flags: <defaults>
</compile_context>

<pallas_src>
import jax
import jax.numpy as jnp
from jax.experimental import pallas as pl
from jax.experimental.pallas import tpu as pltpu


_MAX_BATCH_TILE = 512     # mem-bound sweet spot (sweep 256-1024 if re-tuning)
_SMALL_BATCH_MAX = 256    # <= this: single un-gridded all-VMEM call


def _round_up(n, m):
    return (n + m - 1) // m * m


def _mlp_kernel(x_ref, w1_ref, w2_ref, b_ref, o_ref):
    """o = relu(x @ W1 + b1) @ W2 + b2.

    x arrives in f32 (read from HBM once); the bf16 cast happens here on the
    VPU and hides under the MXU matmuls.  Accumulation is f32 on the MXU;
    bias adds / ReLU stay f32 on the VPU (v5e has no bf16 VALU).

    NOTE: every output row depends only on its own input row, so with a
    non-divisible pl.cdiv grid the unspecified rows of the last (partial)
    x block are harmless -- out-of-range output rows are masked on write.
    Do NOT add a cross-row reduction (e.g. batch mean) here without
    reintroducing explicit zero-padding.
    """
    d_hid = w1_ref.shape[1]
    x = x_ref[...].astype(jnp.bfloat16)
    h = jnp.dot(x, w1_ref[...], preferred_element_type=jnp.float32)
    h = h + b_ref[:, :d_hid]            # b1 slice; free because D_hid % 128 == 0
    h = jnp.maximum(h, 0.0)             # ReLU in f32
    o = jnp.dot(h.astype(jnp.bfloat16), w2_ref[...],
                preferred_element_type=jnp.float32)
    o = o + b_ref[:, d_hid:]            # b2 slice
    o_ref[...] = o.astype(o_ref.dtype)


def _choose_batch_tile(B):
    """Largest batch tile <= 512 that still yields >= 2 grid steps.

    >= 2 steps lets v7x shard the 'parallel' axis across both TensorCores;
    ~512 rows keeps per-grid-step overhead (~0.35 us) negligible vs. the
    ~2 MiB x-tile DMA while staying under scoped VMEM on every generation.
    """
    half = _round_up(-(-B // 2), 128)   # ceil(B/2) rounded up to 128
    return max(128, min(_MAX_BATCH_TILE, half))


def inner_model_forward(x_flat, w1_bf16, w2_bf16, b_packed_f32):
    """Pallas forward of the inner model.

    x_flat:       [B, D_in]      float32 (cast to bf16 inside the kernel)
    w1_bf16:      [D_in, D_hid]  bfloat16
    w2_bf16:      [D_hid, D_out] bfloat16
    b_packed_f32: [1, D_hid + D_out] float32 (b1 and b2 concatenated)
    """
    B, D_in = x_flat.shape
    D_hid = w1_bf16.shape[1]
    D_out = w2_bf16.shape[1]
    x_f32 = x_flat.astype(jnp.float32)

    if B <= _SMALL_BATCH_MAX:
        # Small batch: single un-gridded call, whole arrays resident in VMEM.
        # Full-array BlockSpecs carry no (8,128) block constraint, so x goes
        # in at its natural shape -- no host-side pad, no output crop.
        return pl.pallas_call(
            _mlp_kernel,
            out_shape=jax.ShapeDtypeStruct((B, D_out), jnp.float32),
            in_specs=[
                pl.BlockSpec(memory_space=pltpu.VMEM),
                pl.BlockSpec(memory_space=pltpu.VMEM),
                pl.BlockSpec(memory_space=pltpu.VMEM),
                pl.BlockSpec(memory_space=pltpu.VMEM),
            ],
            out_specs=pl.BlockSpec(memory_space=pltpu.VMEM),
        )(x_f32, w1_bf16, w2_bf16, b_packed_f32)

    # Large batch: tile the batch axis with a non-divisible pl.cdiv grid
    # (no padding / cropping => x read from HBM exactly once).  Weights and
    # the packed bias use constant index_maps so they stay VMEM-resident
    # across batch tiles; the batch axis is "parallel" so v7x shards it
    # across both TensorCores (no effect on v5e/v6e).
    tile = _choose_batch_tile(B)
    cost = pl.CostEstimate(
        flops=2 * B * (D_in * D_hid + D_hid * D_out),
        transcendentals=0,
        bytes_accessed=(B * D_in * 4                          # x f32 read
                        + (D_in * D_hid + D_hid * D_out) * 2  # bf16 weights
                        + (D_hid + D_out) * 4                 # packed bias
                        + B * D_out * 4),                     # f32 output
    )
    return pl.pallas_call(
        _mlp_kernel,
        out_shape=jax.ShapeDtypeStruct((B, D_out), jnp.float32),
        grid=(pl.cdiv(B, tile),),
        in_specs=[
            pl.BlockSpec((tile, D_in), lambda i: (i, 0)),
            pl.BlockSpec((D_in, D_hid), lambda i: (0, 0)),
            pl.BlockSpec((D_hid, D_out), lambda i: (0, 0)),
            pl.BlockSpec((1, D_hid + D_out), lambda i: (0, 0)),
        ],
        out_specs=pl.BlockSpec((tile, D_out), lambda i: (i, 0)),
        compiler_params=pltpu.CompilerParams(
            dimension_semantics=("parallel",)),
        cost_estimate=cost,
    )(x_f32, w1_bf16, w2_bf16, b_packed_f32)


class ModelWrapperJAX:
    """JAX/Pallas equivalent of the PyTorch ModelWrapper: forwards to `model`."""

    def __init__(self, model_fn):
        self.model = model_fn

    def forward(self, x):
        return self.model(x)

    __call__ = forward

    # TODO(synk): save/load use torch.save/torch.load on state_dicts; no
    # Pallas equivalent -- parameters here are built deterministically in-script.


def make_inner_model(params):
    """Build the inner model fn; weights stored in bf16, biases packed in f32."""
    w1, b1, w2, b2 = params
    w1_bf16 = w1.astype(jnp.bfloat16)
    w2_bf16 = w2.astype(jnp.bfloat16)
    b_packed = jnp.concatenate([b1, b2], axis=1).astype(jnp.float32)

    @jax.jit
    def model_fn(x_nchw):
        B = x_nchw.shape[0]
        x_flat = x_nchw.reshape(B, -1)      # glue: flatten NCHW
        return inner_model_forward(x_flat, w1_bf16, w2_bf16, b_packed)

    return model_fn


if __name__ == "__main__":
    key = jax.random.PRNGKey(0)
    k_x, k_w1, k_b1, k_w2, k_b2 = jax.random.split(key, 5)

    B, C, H, W = 2, 4, 16, 16            # NCHW input
    D_in = C * H * W                     # 1024
    D_hid = 256
    D_out = 128

    x = jax.random.normal(k_x, (B, C, H, W), dtype=jnp.float32)

    # Deterministic parameter init (synthetic; not a checkpoint load).
    w1 = jax.random.normal(k_w1, (D_in, D_hid), dtype=jnp.float32) * 0.02
    b1 = jax.random.normal(k_b1, (1, D_hid), dtype=jnp.float32) * 0.01
    w2 = jax.random.normal(k_w2, (D_hid, D_out), dtype=jnp.float32) * 0.02
    b2 = jax.random.normal(k_b2, (1, D_out), dtype=jnp.float32) * 0.01

    wrapper = ModelWrapperJAX(make_inner_model((w1, b1, w2, b2)))
    out = jax.block_until_ready(wrapper(x))

    # Reference with matching bf16 weight/activation precision, f32 accumulation.
    x_flat = x.reshape(B, -1)
    h_ref = jnp.dot(x_flat.astype(jnp.bfloat16), w1.astype(jnp.bfloat16),
                    preferred_element_type=jnp.float32) + b1
    h_ref = jnp.maximum(h_ref, 0.0)
    ref = jnp.dot(h_ref.astype(jnp.bfloat16), w2.astype(jnp.bfloat16),
                  preferred_element_type=jnp.float32) + b2

    assert out.shape == (B, D_out)
    assert jnp.allclose(out, ref, atol=1e-2, rtol=1e-2), (
        float(jnp.max(jnp.abs(out - ref))))

    print("KERNEL_OK")
</pallas_src>

<mosaic_0001>
module attributes {stable_mosaic.version = 11 : i64} {
  func.func @_mlp_kernel(%arg0: memref<2x1024xf32, #tpu.memory_space<vmem>>, %arg1: memref<1024x256xbf16, #tpu.memory_space<vmem>>, %arg2: memref<256x128xbf16, #tpu.memory_space<vmem>>, %arg3: memref<1x384xf32, #tpu.memory_space<vmem>>, %arg4: memref<2x128xf32, #tpu.memory_space<vmem>>) attributes {dimension_semantics = [], scalar_prefetch = 0 : i64, scratch_operands = 0 : i64, tpu.core_type = #tpu.core_type<tc>} {
    %c0 = arith.constant 0 : index
    %c0_0 = arith.constant 0 : index
    %0 = vector.load %arg0[%c0, %c0_0] : memref<2x1024xf32, #tpu.memory_space<vmem>>, vector<2x1024xf32>
    %1 = arith.truncf %0 : vector<2x1024xf32> to vector<2x1024xbf16>
    %c0_1 = arith.constant 0 : index
    %c0_2 = arith.constant 0 : index
    %2 = vector.load %arg1[%c0_1, %c0_2] : memref<1024x256xbf16, #tpu.memory_space<vmem>>, vector<1024x256xbf16>
    %cst = arith.constant dense<0.000000e+00> : vector<2x256xf32>
    %3 = tpu.matmul %1, %2, %cst {dimension_numbers = #tpu.dot_dimension_numbers<[1], [0], [0], [1], [0, 0, 1, 1], [], []>} : vector<2x1024xbf16>, vector<1024x256xbf16>, vector<2x256xf32> -> vector<2x256xf32>
    %c0_3 = arith.constant 0 : index
    %c0_4 = arith.constant 0 : index
    %4 = vector.load %arg3[%c0_3, %c0_4] : memref<1x384xf32, #tpu.memory_space<vmem>>, vector<1x256xf32>
    %5 = vector.broadcast %4 : vector<1x256xf32> to vector<2x256xf32>
    %6 = arith.addf %3, %5 : vector<2x256xf32>
    %cst_5 = arith.constant 0.000000e+00 : f32
    %7 = vector.broadcast %cst_5 : f32 to vector<2x256xf32>
    %8 = arith.maximumf %6, %7 : vector<2x256xf32>
    %9 = arith.truncf %8 : vector<2x256xf32> to vector<2x256xbf16>
    %c0_6 = arith.constant 0 : index
    %c0_7 = arith.constant 0 : index
    %10 = vector.load %arg2[%c0_6, %c0_7] : memref<256x128xbf16, #tpu.memory_space<vmem>>, vector<256x128xbf16>
    %cst_8 = arith.constant dense<0.000000e+00> : vector<2x128xf32>
    %11 = tpu.matmul %9, %10, %cst_8 {dimension_numbers = #tpu.dot_dimension_numbers<[1], [0], [0], [1], [0, 0, 1, 1], [], []>} : vector<2x256xbf16>, vector<256x128xbf16>, vector<2x128xf32> -> vector<2x128xf32>
    %c0_9 = arith.constant 0 : index
    %c256 = arith.constant 256 : index
    %12 = vector.load %arg3[%c0_9, %c256] : memref<1x384xf32, #tpu.memory_space<vmem>>, vector<1x128xf32>
    %13 = vector.broadcast %12 : vector<1x128xf32> to vector<2x128xf32>
    %14 = arith.addf %11, %13 : vector<2x128xf32>
    %c0_10 = arith.constant 0 : index
    %c0_11 = arith.constant 0 : index
    %15 = vector.load %arg4[%c0_10, %c0_11] : memref<2x128xf32, #tpu.memory_space<vmem>>, vector<2x128xf32>
    tpu.vector_store %arg4[%c0_10, %c0_11], %14 {strides = array<i32>} : memref<2x128xf32, #tpu.memory_space<vmem>>, vector<2x128xf32>,
    return
  }
}

</mosaic_0001>

<llo_original>
// kernel: model_fn.1
$region0: #{model_fn.1}
  #allocation0 [shape = 'u32[]', space=smem, size = 0x4, offset = 0x4, fixed_abs, tag = 'smem constant byte address 0x4 - core index']
  #allocation1 [shape = 'u32[144,128]{1,0:T(1,128)}', space=vmem, size = 0x12000, scoped, tag = 'internal scratch']
  %s0 = inlined_call_operand.vmem [shape: f32[2,1024], index: 0, kind: input, shape index: {}]
  %s1 = inlined_call_operand.hbm [shape: bf16[1024,256], index: 1, kind: input, shape index: {}]
  %s2 = inlined_call_operand.vmem [shape: bf16[256,128], index: 2, kind: input, shape index: {}]
  %s3 = inlined_call_operand.vmem [shape: f32[1,384], index: 3, kind: input, shape index: {}]
  %s4 = inlined_call_operand.hbm [shape: f32[2,128], index: 4, kind: output, shape index: {}]
  %s5 = sld [smem:[#allocation0]]
  $region30: #{model_fn.1} parent=0
    _
  %s7 = ssub.s32 1, %s5
  %s8 = scalar_select 0, %s7, %s5
  $region1: #{model_fn.1} parent=0
    #allocation2 [shape = 'u8[524288]{0}', space=vmem, size = 0x80000, scoped, tag = 'input window, operand 1, single buffered']
    #allocation3 [shape = 's32[1]{0}', space=sflag, size = 0x4, scoped, tag = 'scoped memory for model_fn.1']
    #allocation4 [shape = 's32[1]{0}', space=sflag, size = 0x4, scoped, tag = 'scoped memory for model_fn.1']
    #allocation5 [shape = 'u8[1024]{0}', space=vmem, size = 0x400, scoped, tag = 'output window, operand 0, single buffered']
    %9 = vsyncpa [#allocation3], 0
    %10 = vsyncpa [#allocation4], 0
    // Predicated region
    $region2: #{model_fn.1} parent=1 // pred_check
      _
    $region3: #{model_fn.1} parent=1 // pred_check_branch
      %12 = sbr.rel (0) target = $region5
    $region4: #{model_fn.1} parent=1 // pred_region
      _
    $region5: #{model_fn.1} parent=1 // pred_fallthru
      _
    // Predicated region
    $region6: #{model_fn.1} parent=1 // pred_check
      _
    $region7: #{model_fn.1} parent=1 // pred_check_branch
      %14 = sbr.rel (0) target = $region9
    $region8: #{model_fn.1} parent=1 // pred_region
      %s16 = ssub.s32 16384, 16384
      %17 = vsyncadd [#allocation3], %s16
      %s18 = sshll.u32 [#allocation2], 4
      %s19 = int_to_ptr.vmem [resolvable:$true] %s18
      %24 = dma.hbm_to_vmem [thread:$0]  %s1, 16384, %s19, [#allocation3], 128, 128, 8
    $region9: #{model_fn.1} parent=1 // pred_fallthru
      _
    // Predicated region
    $region10: #{model_fn.1} parent=1 // pred_check
      _
    $region11: #{model_fn.1} parent=1 // pred_check_branch
      %26 = sbr.rel (0) target = $region13
    $region12: #{model_fn.1} parent=1 // pred_region
      _
    $region13: #{model_fn.1} parent=1 // pred_fallthru
      _
    // Predicated region
    $region14: #{model_fn.1} parent=1 // pred_check
      _
    $region15: #{model_fn.1} parent=1 // pred_check_branch
      %28 = sbr.rel (0) target = $region17
    $region16: #{model_fn.1} parent=1 // pred_region
      _
    $region17: #{model_fn.1} parent=1 // pred_fallthru
      _
    // Predicated region
    $region18: #{model_fn.1} parent=1 // pred_check
      _
    $region19: #{model_fn.1} parent=1 // pred_check_branch
      %30 = sbr.rel (0) target = $region21
    $region20: #{model_fn.1} parent=1 // pred_region
      %31 = dma.done [#allocation3], 16384
    $region21: #{model_fn.1} parent=1 // pred_fallthru
      _
    %v33 = vld [vmem:[%s0] sm:$0xff]
    %v34 = vld [vmem:[%s0 + $0x8] sm:$0xff]
    %v37 = vcombine.high %v33, %v33
    %v39 = vunpack.c.l.s4 1983009808
    %v40 = vunpack.c.0.s8 %v39
    %v41 = vlaneseq
    %v42 = vshrl.u32 %v41, 7
    %v43 = vsub.s32 %v40, %v42
    %v44 = vrot.slane %v33, %v43
    %v46 = vunpack.c.l.s4 1983009808
    %v47 = vunpack.c.0.s8 %v46
    %v48 = vlaneseq
    %v49 = vshrl.u32 %v48, 7
    %v50 = vsub.s32 %v47, %v49
    %v51 = vrot.slane %v37, %v50
    %v52 = vcombine.high %v44, %v44
    %v53 = vcombine.high %v51, %v51
    %v54 = vcombine.high %v34, %v34
    %v56 = vunpack.c.l.s4 1983009808
    %v57 = vunpack.c.0.s8 %v56
    %v58 = vlaneseq
    %v59 = vshrl.u32 %v58, 7
    %v60 = vsub.s32 %v57, %v59
    %v61 = vrot.slane %v34, %v60
    %v63 = vunpack.c.l.s4 1983009808
    %v64 = vunpack.c.0.s8 %v63
    %v65 = vlaneseq
    %v66 = vshrl.u32 %v65, 7
    %v67 = vsub.s32 %v64, %v66
    %v68 = vrot.slane %v54, %v67
    %v69 = vcombine.high %v61, %v61
    %v70 = vcombine.high %v68, %v68
    %v79 = vpack.c.bf16 %v44, %v44
    %v80 = vpack.c.bf16 %v52, %v52
    %v81 = vpack.c.bf16 %v51, %v51
    %v82 = vpack.c.bf16 %v53, %v53
    %v83 = vpack.c.bf16 %v61, %v61
    %v84 = vpack.c.bf16 %v69, %v69
    %v85 = vpack.c.bf16 %v68, %v68
    %v86 = vpack.c.bf16 %v70, %v70
    %v87 = vld [vmem:[#allocation2] sm:$0xff]
    %v88 = vld [vmem:[#allocation2 + $0x8] sm:$0xff]
    %v89 = vld [vmem:[#allocation2 + $0x10] sm:$0xff]
    %v90 = vld [vmem:[#allocation2 + $0x18] sm:$0xff]
    %v91 = vld [vmem:[#allocation2 + $0x20] sm:$0xff]
    %v92 = vld [vmem:[#allocation2 + $0x28] sm:$0xff]
    %v93 = vld [vmem:[#allocation2 + $0x30] sm:$0xff]
    %v94 = vld [vmem:[#allocation2 + $0x38] sm:$0xff]
    %v95 = vld [vmem:[#allocation2 + $0x40] sm:$0xff]
    %v96 = vld [vmem:[#allocation2 + $0x48] sm:$0xff]
    %v97 = vld [vmem:[#allocation2 + $0x50] sm:$0xff]
    %v98 = vld [vmem:[#allocation2 + $0x58] sm:$0xff]
    %v99 = vld [vmem:[#allocation2 + $0x60] sm:$0xff]
    %v100 = vld [vmem:[#allocation2 + $0x68] sm:$0xff]
    %v101 = vld [vmem:[#allocation2 + $0x70] sm:$0xff]
    %v102 = vld [vmem:[#allocation2 + $0x78] sm:$0xff]
    %v103 = vld [vmem:[#allocation2 + $0x80] sm:$0xff]
    %v104 = vld [vmem:[#allocation2 + $0x88] sm:$0xff]
    %v105 = vld [vmem:[#allocation2 + $0x90] sm:$0xff]
    %v106 = vld [vmem:[#allocation2 + $0x98] sm:$0xff]
    %v107 = vld [vmem:[#allocation2 + $0xa0] sm:$0xff]
    %v108 = vld [vmem:[#allocation2 + $0xa8] sm:$0xff]
    %v109 = vld [vmem:[#allocation2 + $0xb0] sm:$0xff]
    %v110 = vld [vmem:[#allocation2 + $0xb8] sm:$0xff]
    %v111 = vld [vmem:[#allocation2 + $0xc0] sm:$0xff]
    %v112 = vld [vmem:[#allocation2 + $0xc8] sm:$0xff]
    %v113 = vld [vmem:[#allocation2 + $0xd0] sm:$0xff]
    %v114 = vld [vmem:[#allocation2 + $0xd8] sm:$0xff]
    %v115 = vld [vmem:[#allocation2 + $0xe0] sm:$0xff]
    %v116 = vld [vmem:[#allocation2 + $0xe8] sm:$0xff]
    %v117 = vld [vmem:[#allocation2 + $0xf0] sm:$0xff]
    %v118 = vld [vmem:[#allocation2 + $0xf8] sm:$0xff]
    %v119 = vld [vmem:[#allocation2 + $0x100] sm:$0xff]
    %v120 = vld [vmem:[#allocation2 + $0x108] sm:$0xff]
    %v121 = vld [vmem:[#allocation2 + $0x110] sm:$0xff]
    %v122 = vld [vmem:[#allocation2 + $0x118] sm:$0xff]
    %v123 = vld [vmem:[#allocation2 + $0x120] sm:$0xff]
    %v124 = vld [vmem:[#allocation2 + $0x128] sm:$0xff]
    %v125 = vld [vmem:[#allocation2 + $0x130] sm:$0xff]
    %v126 = vld [vmem:[#allocation2 + $0x138] sm:$0xff]
    %v127 = vld [vmem:[#allocation2 + $0x140] sm:$0xff]
    %v128 = vld [vmem:[#allocation2 + $0x148] sm:$0xff]
    %v129 = vld [vmem:[#allocation2 + $0x150] sm:$0xff]
    %v130 = vld [vmem:[#allocation2 + $0x158] sm:$0xff]
    %v131 = vld [vmem:[#allocation2 + $0x160] sm:$0xff]
    %v132 = vld [vmem:[#allocation2 + $0x168] sm:$0xff]
    %v133 = vld [vmem:[#allocation2 + $0x170] sm:$0xff]
    %v134 = vld [vmem:[#allocation2 + $0x178] sm:$0xff]
    %v135 = vld [vmem:[#allocation2 + $0x180] sm:$0xff]
    %v136 = vld [vmem:[#allocation2 + $0x188] sm:$0xff]
    %v137 = vld [vmem:[#allocation2 + $0x190] sm:$0xff]
    %v138 = vld [vmem:[#allocation2 + $0x198] sm:$0xff]
    %v139 = vld [vmem:[#allocation2 + $0x1a0] sm:$0xff]
    %v140 = vld [vmem:[#allocation2 + $0x1a8] sm:$0xff]
    %v141 = vld [vmem:[#allocation2 + $0x1b0] sm:$0xff]
    %v142 = vld [vmem:[#allocation2 + $0x1b8] sm:$0xff]
    %v143 = vld [vmem:[#allocation2 + $0x1c0] sm:$0xff]
    %v144 = vld [vmem:[#allocation2 + $0x1c8] sm:$0xff]
    %v145 = vld [vmem:[#allocation2 + $0x1d0] sm:$0xff]
    %v146 = vld [vmem:[#allocation2 + $0x1d8] sm:$0xff]
    %v147 = vld [vmem:[#allocation2 + $0x1e0] sm:$0xff]
    %v148 = vld [vmem:[#allocation2 + $0x1e8] sm:$0xff]
    %v149 = vld [vmem:[#allocation2 + $0x1f0] sm:$0xff]
    %v150 = vld [vmem:[#allocation2 + $0x1f8] sm:$0xff]
    %v151 = vld [vmem:[#allocation2 + $0x200] sm:$0xff]
    %v152 = vld [vmem:[#allocation2 + $0x208] sm:$0xff]
    %v153 = vld [vmem:[#allocation2 + $0x210] sm:$0xff]
    %v154 = vld [vmem:[#allocation2 + $0x218] sm:$0xff]
    %v155 = vld [vmem:[#allocation2 + $0x220] sm:$0xff]
    %v156 = vld [vmem:[#allocation2 + $0x228] sm:$0xff]
    %v157 = vld [vmem:[#allocation2 + $0x230] sm:$0xff]
    %v158 = vld [vmem:[#allocation2 + $0x238] sm:$0xff]
    %v159 = vld [vmem:[#allocation2 + $0x240] sm:$0xff]
    %v160 = vld [vmem:[#allocation2 + $0x248] sm:$0xff]
    %v161 = vld [vmem:[#allocation2 + $0x250] sm:$0xff]
    %v162 = vld [vmem:[#allocation2 + $0x258] sm:$0xff]
    %v163 = vld [vmem:[#allocation2 + $0x260] sm:$0xff]
    %v164 = vld [vmem:[#allocation2 + $0x268] sm:$0xff]
    %v165 = vld [vmem:[#allocation2 + $0x270] sm:$0xff]
    %v166 = vld [vmem:[#allocation2 + $0x278] sm:$0xff]
    %v167 = vld [vmem:[#allocation2 + $0x280] sm:$0xff]
    %v168 = vld [vmem:[#allocation2 + $0x288] sm:$0xff]
    %v169 = vld [vmem:[#allocation2 + $0x290] sm:$0xff]
    %v170 = vld [vmem:[#allocation2 + $0x298] sm:$0xff]
    %v171 = vld [vmem:[#allocation2 + $0x2a0] sm:$0xff]
    %v172 = vld [vmem:[#allocation2 + $0x2a8] sm:$0xff]
    %v173 = vld [vmem:[#allocation2 + $0x2b0] sm:$0xff]
    %v174 = vld [vmem:[#allocation2 + $0x2b8] sm:$0xff]
    %v175 = vld [vmem:[#allocation2 + $0x2c0] sm:$0xff]
    %v176 = vld [vmem:[#allocation2 + $0x2c8] sm:$0xff]
    %v177 = vld [vmem:[#allocation2 + $0x2d0] sm:$0xff]
    %v178 = vld [vmem:[#allocation2 + $0x2d8] sm:$0xff]
    %v179 = vld [vmem:[#allocation2 + $0x2e0] sm:$0xff]
    %v180 = vld [vmem:[#allocation2 + $0x2e8] sm:$0xff]
    %v181 = vld [vmem:[#allocation2 + $0x2f0] sm:$0xff]
    %v182 = vld [vmem:[#allocation2 + $0x2f8] sm:$0xff]
    %v183 = vld [vmem:[#allocation2 + $0x300] sm:$0xff]
    %v184 = vld [vmem:[#allocation2 + $0x308] sm:$0xff]
    %v185 = vld [vmem:[#allocation2 + $0x310] sm:$0xff]
    %v186 = vld [vmem:[#allocation2 + $0x318] sm:$0xff]
    %v187 = vld [vmem:[#allocation2 + $0x320] sm:$0xff]
    %v188 = vld [vmem:[#allocation2 + $0x328] sm:$0xff]
    %v189 = vld [vmem:[#allocation2 + $0x330] sm:$0xff]
    %v190 = vld [vmem:[#allocation2 + $0x338] sm:$0xff]
    %v191 = vld [vmem:[#allocation2 + $0x340] sm:$0xff]
    %v192 = vld [vmem:[#allocation2 + $0x348] sm:$0xff]
    %v193 = vld [vmem:[#allocation2 + $0x350] sm:$0xff]
    %v194 = vld [vmem:[#allocation2 + $0x358] sm:$0xff]
    %v195 = vld [vmem:[#allocation2 + $0x360] sm:$0xff]
    %v196 = vld [vmem:[#allocation2 + $0x368] sm:$0xff]
    %v197 = vld [vmem:[#allocation2 + $0x370] sm:$0xff]
    %v198 = vld [vmem:[#allocation2 + $0x378] sm:$0xff]
    %v199 = vld [vmem:[#allocation2 + $0x380] sm:$0xff]
    %v200 = vld [vmem:[#allocation2 + $0x388] sm:$0xff]
    %v201 = vld [vmem:[#allocation2 + $0x390] sm:$0xff]
    %v202 = vld [vmem:[#allocation2 + $0x398] sm:$0xff]
    %v203 = vld [vmem:[#allocation2 + $0x3a0] sm:$0xff]
    %v204 = vld [vmem:[#allocation2 + $0x3a8] sm:$0xff]
    %v205 = vld [vmem:[#allocation2 + $0x3b0] sm:$0xff]
    %v206 = vld [vmem:[#allocation2 + $0x3b8] sm:$0xff]
    %v207 = vld [vmem:[#allocation2 + $0x3c0] sm:$0xff]
    %v208 = vld [vmem:[#allocation2 + $0x3c8] sm:$0xff]
    %v209 = vld [vmem:[#allocation2 + $0x3d0] sm:$0xff]
    %v210 = vld [vmem:[#allocation2 + $0x3d8] sm:$0xff]
    %v211 = vld [vmem:[#allocation2 + $0x3e0] sm:$0xff]
    %v212 = vld [vmem:[#allocation2 + $0x3e8] sm:$0xff]
    %v213 = vld [vmem:[#allocation2 + $0x3f0] sm:$0xff]
    %v214 = vld [vmem:[#allocation2 + $0x3f8] sm:$0xff]
    %v215 = vld [vmem:[%s3] sm:$0x3]
    %v217 = vlaneseq
    %v218 = vshrl.u32 %v217, 7
    %v219 = vsub.s32 0, %v218
    %v220 = vrot.slane %v215, %v219
    %v221 = vlaneseq
    %v222 = vshrl.u32 %v221, 7
    %v223 = vsub.s32 1, %v222
    %v224 = vrot.slane %v215, %v223
    %v355 = vunpack.c.l.b16 %v87
    %v356 = vunpack.c.h.b16 %v87
    %v357 = vunpack.c.l.b16 %v88
    %v358 = vunpack.c.h.b16 %v88
    %v359 = vunpack.c.l.b16 %v89
    %v360 = vunpack.c.h.b16 %v89
    %v361 = vunpack.c.l.b16 %v90
    %v362 = vunpack.c.h.b16 %v90
    %v363 = vunpack.c.l.b16 %v91
    %v364 = vunpack.c.h.b16 %v91
    %v365 = vunpack.c.l.b16 %v92
    %v366 = vunpack.c.h.b16 %v92
    %v367 = vunpack.c.l.b16 %v93
    %v368 = vunpack.c.h.b16 %v93
    %v369 = vunpack.c.l.b16 %v94
    %v370 = vunpack.c.h.b16 %v94
    %v371 = vunpack.c.l.b16 %v95
    %v372 = vunpack.c.h.b16 %v95
    %v373 = vunpack.c.l.b16 %v96
    %v374 = vunpack.c.h.b16 %v96
    %v375 = vunpack.c.l.b16 %v97
    %v376 = vunpack.c.h.b16 %v97
    %v377 = vunpack.c.l.b16 %v98
    %v378 = vunpack.c.h.b16 %v98
    %v379 = vunpack.c.l.b16 %v99
    %v380 = vunpack.c.h.b16 %v99
    %v381 = vunpack.c.l.b16 %v100
    %v382 = vunpack.c.h.b16 %v100
    %v383 = vunpack.c.l.b16 %v101
    %v384 = vunpack.c.h.b16 %v101
    %v385 = vunpack.c.l.b16 %v102
    %v386 = vunpack.c.h.b16 %v102
    %v387 = vunpack.c.l.b16 %v103
    %v388 = vunpack.c.h.b16 %v103
    %v389 = vunpack.c.l.b16 %v104
    %v390 = vunpack.c.h.b16 %v104
    %v391 = vunpack.c.l.b16 %v105
    %v392 = vunpack.c.h.b16 %v105
    %v393 = vunpack.c.l.b16 %v106
    %v394 = vunpack.c.h.b16 %v106
    %v395 = vunpack.c.l.b16 %v107
    %v396 = vunpack.c.h.b16 %v107
    %v397 = vunpack.c.l.b16 %v108
    %v398 = vunpack.c.h.b16 %v108
    %v399 = vunpack.c.l.b16 %v109
    %v400 = vunpack.c.h.b16 %v109
    %v401 = vunpack.c.l.b16 %v110
    %v402 = vunpack.c.h.b16 %v110
    %v403 = vunpack.c.l.b16 %v111
    %v404 = vunpack.c.h.b16 %v111
    %v405 = vunpack.c.l.b16 %v112
    %v406 = vunpack.c.h.b16 %v112
    %v407 = vunpack.c.l.b16 %v113
    %v408 = vunpack.c.h.b16 %v113
    %v409 = vunpack.c.l.b16 %v114
    %v410 = vunpack.c.h.b16 %v114
    %v411 = vunpack.c.l.b16 %v115
    %v412 = vunpack.c.h.b16 %v115
    %v413 = vunpack.c.l.b16 %v116
    %v414 = vunpack.c.h.b16 %v116
    %v415 = vunpack.c.l.b16 %v117
    %v416 = vunpack.c.h.b16 %v117
    %v417 = vunpack.c.l.b16 %v118
    %v418 = vunpack.c.h.b16 %v118
    %v419 = vunpack.c.l.b16 %v119
    %v420 = vunpack.c.h.b16 %v119
    %v421 = vunpack.c.l.b16 %v120
    %v422 = vunpack.c.h.b16 %v120
    %v423 = vunpack.c.l.b16 %v121
    %v424 = vunpack.c.h.b16 %v121
    %v425 = vunpack.c.l.b16 %v122
    %v426 = vunpack.c.h.b16 %v122
    %v427 = vunpack.c.l.b16 %v123
    %v428 = vunpack.c.h.b16 %v123
    %v429 = vunpack.c.l.b16 %v124
    %v430 = vunpack.c.h.b16 %v124
    %v431 = vunpack.c.l.b16 %v125
    %v432 = vunpack.c.h.b16 %v125
    %v433 = vunpack.c.l.b16 %v126
    %v434 = vunpack.c.h.b16 %v126
    %v435 = vunpack.c.l.b16 %v127
    %v436 = vunpack.c.h.b16 %v127
    %v437 = vunpack.c.l.b16 %v128
    %v438 = vunpack.c.h.b16 %v128
    %v439 = vunpack.c.l.b16 %v129
    %v440 = vunpack.c.h.b16 %v129
    %v441 = vunpack.c.l.b16 %v130
    %v442 = vunpack.c.h.b16 %v130
    %v443 = vunpack.c.l.b16 %v131
    %v444 = vunpack.c.h.b16 %v131
    %v445 = vunpack.c.l.b16 %v132
    %v446 = vunpack.c.h.b16 %v132
    %v447 = vunpack.c.l.b16 %v133
    %v448 = vunpack.c.h.b16 %v133
    %v449 = vunpack.c.l.b16 %v134
    %v450 = vunpack.c.h.b16 %v134
    %v451 = vunpack.c.l.b16 %v135
    %v452 = vunpack.c.h.b16 %v135
    %v453 = vunpack.c.l.b16 %v136
    %v454 = vunpack.c.h.b16 %v136
    %v455 = vunpack.c.l.b16 %v137
    %v456 = vunpack.c.h.b16 %v137
    %v457 = vunpack.c.l.b16 %v138
    %v458 = vunpack.c.h.b16 %v138
    %v459 = vunpack.c.l.b16 %v139
    %v460 = vunpack.c.h.b16 %v139
    %v461 = vunpack.c.l.b16 %v140
    %v462 = vunpack.c.h.b16 %v140
    %v463 = vunpack.c.l.b16 %v141
    %v464 = vunpack.c.h.b16 %v141
    %v465 = vunpack.c.l.b16 %v142
    %v466 = vunpack.c.h.b16 %v142
    %v467 = vunpack.c.l.b16 %v143
    %v468 = vunpack.c.h.b16 %v143
    %v469 = vunpack.c.l.b16 %v144
    %v470 = vunpack.c.h.b16 %v144
    %v471 = vunpack.c.l.b16 %v145
    %v472 = vunpack.c.h.b16 %v145
    %v473 = vunpack.c.l.b16 %v146
    %v474 = vunpack.c.h.b16 %v146
    %v475 = vunpack.c.l.b16 %v147
    %v476 = vunpack.c.h.b16 %v147
    %v477 = vunpack.c.l.b16 %v148
    %v478 = vunpack.c.h.b16 %v148
    %v479 = vunpack.c.l.b16 %v149
    %v480 = vunpack.c.h.b16 %v149
    %v481 = vunpack.c.l.b16 %v150
    %v482 = vunpack.c.h.b16 %v150
    %v483 = vunpack.c.l.b16 %v151
    %v484 = vunpack.c.h.b16 %v151
    %v485 = vunpack.c.l.b16 %v152
    %v486 = vunpack.c.h.b16 %v152
    %v487 = vunpack.c.l.b16 %v153
    %v488 = vunpack.c.h.b16 %v153
    %v489 = vunpack.c.l.b16 %v154
    %v490 = vunpack.c.h.b16 %v154
    %v491 = vunpack.c.l.b16 %v155
    %v492 = vunpack.c.h.b16 %v155
    %v493 = vunpack.c.l.b16 %v156
    %v494 = vunpack.c.h.b16 %v156
    %v495 = vunpack.c.l.b16 %v157
    %v496 = vunpack.c.h.b16 %v157
    %v497 = vunpack.c.l.b16 %v158
    %v498 = vunpack.c.h.b16 %v158
    %v499 = vunpack.c.l.b16 %v159
    %v500 = vunpack.c.h.b16 %v159
    %v501 = vunpack.c.l.b16 %v160
    %v502 = vunpack.c.h.b16 %v160
    %v503 = vunpack.c.l.b16 %v161
    %v504 = vunpack.c.h.b16 %v161
    %v505 = vunpack.c.l.b16 %v162
    %v506 = vunpack.c.h.b16 %v162
    %v507 = vunpack.c.l.b16 %v163
    %v508 = vunpack.c.h.b16 %v163
    %v509 = vunpack.c.l.b16 %v164
    %v510 = vunpack.c.h.b16 %v164
    %v511 = vunpack.c.l.b16 %v165
    %v512 = vunpack.c.h.b16 %v165
    %v513 = vunpack.c.l.b16 %v166
    %v514 = vunpack.c.h.b16 %v166
    %v515 = vunpack.c.l.b16 %v167
    %v516 = vunpack.c.h.b16 %v167
    %v517 = vunpack.c.l.b16 %v168
    %v518 = vunpack.c.h.b16 %v168
    %v519 = vunpack.c.l.b16 %v169
    %v520 = vunpack.c.h.b16 %v169
    %v521 = vunpack.c.l.b16 %v170
    %v522 = vunpack.c.h.b16 %v170
    %v523 = vunpack.c.l.b16 %v171
    %v524 = vunpack.c.h.b16 %v171
    %v525 = vunpack.c.l.b16 %v172
    %v526 = vunpack.c.h.b16 %v172
    %v527 = vunpack.c.l.b16 %v173
    %v528 = vunpack.c.h.b16 %v173
    %v529 = vunpack.c.l.b16 %v174
    %v530 = vunpack.c.h.b16 %v174
    %v531 = vunpack.c.l.b16 %v175
    %v532 = vunpack.c.h.b16 %v175
    %v533 = vunpack.c.l.b16 %v176
    %v534 = vunpack.c.h.b16 %v176
    %v535 = vunpack.c.l.b16 %v177
    %v536 = vunpack.c.h.b16 %v177
    %v537 = vunpack.c.l.b16 %v178
    %v538 = vunpack.c.h.b16 %v178
    %v539 = vunpack.c.l.b16 %v179
    %v540 = vunpack.c.h.b16 %v179
    %v541 = vunpack.c.l.b16 %v180
    %v542 = vunpack.c.h.b16 %v180
    %v543 = vunpack.c.l.b16 %v181
    %v544 = vunpack.c.h.b16 %v181
    %v545 = vunpack.c.l.b16 %v182
    %v546 = vunpack.c.h.b16 %v182
    %v547 = vunpack.c.l.b16 %v183
    %v548 = vunpack.c.h.b16 %v183
    %v549 = vunpack.c.l.b16 %v184
    %v550 = vunpack.c.h.b16 %v184
    %v551 = vunpack.c.l.b16 %v185
    %v552 = vunpack.c.h.b16 %v185
    %v553 = vunpack.c.l.b16 %v186
    %v554 = vunpack.c.h.b16 %v186
    %v555 = vunpack.c.l.b16 %v187
    %v556 = vunpack.c.h.b16 %v187
    %v557 = vunpack.c.l.b16 %v188
    %v558 = vunpack.c.h.b16 %v188
    %v559 = vunpack.c.l.b16 %v189
    %v560 = vunpack.c.h.b16 %v189
    %v561 = vunpack.c.l.b16 %v190
    %v562 = vunpack.c.h.b16 %v190
    %v563 = vunpack.c.l.b16 %v191
    %v564 = vunpack.c.h.b16 %v191
    %v565 = vunpack.c.l.b16 %v192
    %v566 = vunpack.c.h.b16 %v192
    %v567 = vunpack.c.l.b16 %v193
    %v568 = vunpack.c.h.b16 %v193
    %v569 = vunpack.c.l.b16 %v194
    %v570 = vunpack.c.h.b16 %v194
    %v571 = vunpack.c.l.b16 %v195
    %v572 = vunpack.c.h.b16 %v195
    %v573 = vunpack.c.l.b16 %v196
    %v574 = vunpack.c.h.b16 %v196
    %v575 = vunpack.c.l.b16 %v197
    %v576 = vunpack.c.h.b16 %v197
    %v577 = vunpack.c.l.b16 %v198
    %v578 = vunpack.c.h.b16 %v198
    %v579 = vunpack.c.l.b16 %v199
    %v580 = vunpack.c.h.b16 %v199
    %v581 = vunpack.c.l.b16 %v200
    %v582 = vunpack.c.h.b16 %v200
    %v583 = vunpack.c.l.b16 %v201
    %v584 = vunpack.c.h.b16 %v201
    %v585 = vunpack.c.l.b16 %v202
    %v586 = vunpack.c.h.b16 %v202
    %v587 = vunpack.c.l.b16 %v203
    %v588 = vunpack.c.h.b16 %v203
    %v589 = vunpack.c.l.b16 %v204
    %v590 = vunpack.c.h.b16 %v204
    %v591 = vunpack.c.l.b16 %v205
    %v592 = vunpack.c.h.b16 %v205
    %v593 = vunpack.c.l.b16 %v206
    %v594 = vunpack.c.h.b16 %v206
    %v595 = vunpack.c.l.b16 %v207
    %v596 = vunpack.c.h.b16 %v207
    %v597 = vunpack.c.l.b16 %v208
    %v598 = vunpack.c.h.b16 %v208
    %v599 = vunpack.c.l.b16 %v209
    %v600 = vunpack.c.h.b16 %v209
    %v601 = vunpack.c.l.b16 %v210
    %v602 = vunpack.c.h.b16 %v210
    %v603 = vunpack.c.l.b16 %v211
    %v604 = vunpack.c.h.b16 %v211
    %v605 = vunpack.c.l.b16 %v212
    %v606 = vunpack.c.h.b16 %v212
    %v607 = vunpack.c.l.b16 %v213
    %v608 = vunpack.c.h.b16 %v213
    %v609 = vunpack.c.l.b16 %v214
    %v610 = vunpack.c.h.b16 %v214
    %v611 = vpack.c.b16 %v357, %v355
    %v612 = vpack.c.b16 %v358, %v356
    %v613 = vpack.c.b16 %v361, %v359
    %v614 = vpack.c.b16 %v362, %v360
    %v615 = vpack.c.b16 %v365, %v363
    %v616 = vpack.c.b16 %v366, %v364
    %v617 = vpack.c.b16 %v369, %v367
    %v618 = vpack.c.b16 %v370, %v368
    %v619 = vpack.c.b16 %v373, %v371
    %v620 = vpack.c.b16 %v374, %v372
    %v621 = vpack.c.b16 %v377, %v375
    %v622 = vpack.c.b16 %v378, %v376
    %v623 = vpack.c.b16 %v381, %v379
    %v624 = vpack.c.b16 %v382, %v380
    %v625 = vpack.c.b16 %v385, %v383
    %v626 = vpack.c.b16 %v386, %v384
    %v627 = vpack.c.b16 %v389, %v387
    %v628 = vpack.c.b16 %v390, %v388
    %v629 = vpack.c.b16 %v393, %v391
    %v630 = vpack.c.b16 %v394, %v392
    %v631 = vpack.c.b16 %v397, %v395
    %v632 = vpack.c.b16 %v398, %v396
    %v633 = vpack.c.b16 %v401, %v399
    %v634 = vpack.c.b16 %v402, %v400
    %v635 = vpack.c.b16 %v405, %v403
    %v636 = vpack.c.b16 %v406, %v404
    %v637 = vpack.c.b16 %v409, %v407
    %v638 = vpack.c.b16 %v410, %v408
    %v639 = vpack.c.b16 %v413, %v411
    %v640 = vpack.c.b16 %v414, %v412
    %v641 = vpack.c.b16 %v417, %v415
    %v642 = vpack.c.b16 %v418, %v416
    %v643 = vpack.c.b16 %v421, %v419
    %v644 = vpack.c.b16 %v422, %v420
    %v645 = vpack.c.b16 %v425, %v423
    %v646 = vpack.c.b16 %v426, %v424
    %v647 = vpack.c.b16 %v429, %v427
    %v648 = vpack.c.b16 %v430, %v428
    %v649 = vpack.c.b16 %v433, %v431
    %v650 = vpack.c.b16 %v434, %v432
    %v651 = vpack.c.b16 %v437, %v435
    %v652 = vpack.c.b16 %v438, %v436
    %v653 = vpack.c.b16 %v441, %v439
    %v654 = vpack.c.b16 %v442, %v440
    %v655 = vpack.c.b16 %v445, %v443
    %v656 = vpack.c.b16 %v446, %v444
    %v657 = vpack.c.b16 %v449, %v447
    %v658 = vpack.c.b16 %v450, %v448
    %v659 = vpack.c.b16 %v453, %v451
    %v660 = vpack.c.b16 %v454, %v452
    %v661 = vpack.c.b16 %v457, %v455
    %v662 = vpack.c.b16 %v458, %v456
    %v663 = vpack.c.b16 %v461, %v459
    %v664 = vpack.c.b16 %v462, %v460
    %v665 = vpack.c.b16 %v465, %v463
    %v666 = vpack.c.b16 %v466, %v464
    %v667 = vpack.c.b16 %v469, %v467
    %v668 = vpack.c.b16 %v470, %v468
    %v669 = vpack.c.b16 %v473, %v471
    %v670 = vpack.c.b16 %v474, %v472
    %v671 = vpack.c.b16 %v477, %v475
    %v672 = vpack.c.b16 %v478, %v476
    %v673 = vpack.c.b16 %v481, %v479
    %v674 = vpack.c.b16 %v482, %v480
    %v675 = vpack.c.b16 %v485, %v483
    %v676 = vpack.c.b16 %v486, %v484
    %v677 = vpack.c.b16 %v489, %v487
    %v678 = vpack.c.b16 %v490, %v488
    %v679 = vpack.c.b16 %v493, %v491
    %v680 = vpack.c.b16 %v494, %v492
    %v681 = vpack.c.b16 %v497, %v495
    %v682 = vpack.c.b16 %v498, %v496
    %v683 = vpack.c.b16 %v501, %v499
    %v684 = vpack.c.b16 %v502, %v500
    %v685 = vpack.c.b16 %v505, %v503
    %v686 = vpack.c.b16 %v506, %v504
    %v687 = vpack.c.b16 %v509, %v507
    %v688 = vpack.c.b16 %v510, %v508
    %v689 = vpack.c.b16 %v513, %v511
    %v690 = vpack.c.b16 %v514, %v512
    %v691 = vpack.c.b16 %v517, %v515
    %v692 = vpack.c.b16 %v518, %v516
    %v693 = vpack.c.b16 %v521, %v519
    %v694 = vpack.c.b16 %v522, %v520
    %v695 = vpack.c.b16 %v525, %v523
    %v696 = vpack.c.b16 %v526, %v524
    %v697 = vpack.c.b16 %v529, %v527
    %v698 = vpack.c.b16 %v530, %v528
    %v699 = vpack.c.b16 %v533, %v531
    %v700 = vpack.c.b16 %v534, %v532
    %v701 = vpack.c.b16 %v537, %v535
    %v702 = vpack.c.b16 %v538, %v536
    %v703 = vpack.c.b16 %v541, %v539
    %v704 = vpack.c.b16 %v542, %v540
    %v705 = vpack.c.b16 %v545, %v543
    %v706 = vpack.c.b16 %v546, %v544
    %v707 = vpack.c.b16 %v549, %v547
    %v708 = vpack.c.b16 %v550, %v548
    %v709 = vpack.c.b16 %v553, %v551
    %v710 = vpack.c.b16 %v554, %v552
    %v711 = vpack.c.b16 %v557, %v555
    %v712 = vpack.c.b16 %v558, %v556
    %v713 = vpack.c.b16 %v561, %v559
    %v714 = vpack.c.b16 %v562, %v560
    %v715 = vpack.c.b16 %v565, %v563
    %v716 = vpack.c.b16 %v566, %v564
    %v717 = vpack.c.b16 %v569, %v567
    %v718 = vpack.c.b16 %v570, %v568
    %v719 = vpack.c.b16 %v573, %v571
    %v720 = vpack.c.b16 %v574, %v572
    %v721 = vpack.c.b16 %v577, %v575
    %v722 = vpack.c.b16 %v578, %v576
    %v723 = vpack.c.b16 %v581, %v579
    %v724 = vpack.c.b16 %v582, %v580
    %v725 = vpack.c.b16 %v585, %v583
    %v726 = vpack.c.b16 %v586, %v584
    %v727 = vpack.c.b16 %v589, %v587
    %v728 = vpack.c.b16 %v590, %v588
    %v729 = vpack.c.b16 %v593, %v591
    %v730 = vpack.c.b16 %v594, %v592
    %v731 = vpack.c.b16 %v597, %v595
    %v732 = vpack.c.b16 %v598, %v596
    %v733 = vpack.c.b16 %v601, %v599
    %v734 = vpack.c.b16 %v602, %v600
    %v735 = vpack.c.b16 %v605, %v603
    %v736 = vpack.c.b16 %v606, %v604
    %v737 = vpack.c.b16 %v609, %v607
    %v738 = vpack.c.b16 %v610, %v608
    %867 = vmatprep.subr.bf16.mxu0 %v626
    %868 = vmatpush1.bf16.msra.mxu0 %v625
    %869 = vmatprep.subr.bf16.mxu0 %v624
    %870 = vmatpush1.bf16.msra.mxu0 %v623
    %871 = vmatprep.subr.bf16.mxu0 %v622
    %872 = vmatpush1.bf16.msra.mxu0 %v621
    %873 = vmatprep.subr.bf16.mxu0 %v620
    %874 = vmatpush1.bf16.msra.mxu0 %v619
    %875 = vmatprep.subr.bf16.mxu0 %v618
    %876 = vmatpush1.bf16.msra.mxu0 %v617
    %877 = vmatprep.subr.bf16.mxu0 %v616
    %878 = vmatpush1.bf16.msra.mxu0 %v615
    %879 = vmatprep.subr.bf16.mxu0 %v614
    %880 = vmatpush1.bf16.msra.mxu0 %v613
    %881 = vmatprep.subr.bf16.mxu0 %v612
    %882 = vmatpush1.bf16.msra.mxu0 %v611
    %883 = vmatprep.subr.bf16.mxu0 %v642
    %884 = vmatpush2.bf16.msra.mxu0 %v641
    %885 = vmatprep.subr.bf16.mxu0 %v640
    %886 = vmatpush2.bf16.msra.mxu0 %v639
    %887 = vmatprep.subr.bf16.mxu0 %v638
    %888 = vmatpush2.bf16.msra.mxu0 %v637
    %889 = vmatprep.subr.bf16.mxu0 %v636
    %890 = vmatpush2.bf16.msra.mxu0 %v635
    %891 = vmatprep.subr.bf16.mxu0 %v634
    %892 = vmatpush2.bf16.msra.mxu0 %v633
    %893 = vmatprep.subr.bf16.mxu0 %v632
    %894 = vmatpush2.bf16.msra.mxu0 %v631
    %895 = vmatprep.subr.bf16.mxu0 %v630
    %896 = vmatpush2.bf16.msra.mxu0 %v629
    %897 = vmatprep.subr.bf16.mxu0 %v628
    %898 = vmatpush2.bf16.msra.mxu0 %v627
    %899 = vmatprep.mubr.bf16.mxu0 %v80
    %900 = vmatmul.mubr.bf16.gmra.mxu0 %v79
    %v901 = vpop.f32.mrf.mxu0
    %v902 = vadd.f32 %v220, %v901
    %v903 = vpop.f32.mrf.mxu0
    %v904 = vadd.f32 %v224, %v903
    %v905 = vpop.f32.mrf.mxu0
    %v906 = vpop.f32.mrf.mxu0
    %907 = vdwg.mxu0
    %908 = vmatprep.subr.bf16.mxu0 %v658
    %909 = vmatpush1.bf16.msra.mxu0 %v657
    %910 = vmatprep.subr.bf16.mxu0 %v656
    %911 = vmatpush1.bf16.msra.mxu0 %v655
    %912 = vmatprep.subr.bf16.mxu0 %v654
    %913 = vmatpush1.bf16.msra.mxu0 %v653
    %914 = vmatprep.subr.bf16.mxu0 %v652
    %915 = vmatpush1.bf16.msra.mxu0 %v651
    %916 = vmatprep.subr.bf16.mxu0 %v650
    %917 = vmatpush1.bf16.msra.mxu0 %v649
    %918 = vmatprep.subr.bf16.mxu0 %v648
    %919 = vmatpush1.bf16.msra.mxu0 %v647
    %920 = vmatprep.subr.bf16.mxu0 %v646
    %921 = vmatpush1.bf16.msra.mxu0 %v645
    %922 = vmatprep.subr.bf16.mxu0 %v644
    %923 = vmatpush1.bf16.msra.mxu0 %v643
    %924 = vmatprep.subr.bf16.mxu0 %v674
    %925 = vmatpush2.bf16.msra.mxu0 %v673
    %926 = vmatprep.subr.bf16.mxu0 %v672
    %927 = vmatpush2.bf16.msra.mxu0 %v671
    %928 = vmatprep.subr.bf16.mxu0 %v670
    %929 = vmatpush2.bf16.msra.mxu0 %v669
    %930 = vmatprep.subr.bf16.mxu0 %v668
    %931 = vmatpush2.bf16.msra.mxu0 %v667
    %932 = vmatprep.subr.bf16.mxu0 %v666
    %933 = vmatpush2.bf16.msra.mxu0 %v665
    %934 = vmatprep.subr.bf16.mxu0 %v664
    %935 = vmatpush2.bf16.msra.mxu0 %v663
    %936 = vmatprep.subr.bf16.mxu0 %v662
    %937 = vmatpush2.bf16.msra.mxu0 %v661
    %938 = vmatprep.subr.bf16.mxu0 %v660
    %939 = vmatpush2.bf16.msra.mxu0 %v659
    %940 = vmatprep.mubr.bf16.mxu0 %v82
    %941 = vmatmul.mubr.bf16.gmra.mxu0 %v81
    %v942 = vpop.f32.mrf.mxu0
    %v943 = vadd.f32 %v902, %v942
    %v944 = vpop.f32.mrf.mxu0
    %v945 = vadd.f32 %v904, %v944
    %v946 = vpop.f32.mrf.mxu0
    %v947 = vpop.f32.mrf.mxu0
    %948 = vdwg.mxu0
    %949 = vmatprep.subr.bf16.mxu0 %v690
    %950 = vmatpush1.bf16.msra.mxu0 %v689
    %951 = vmatprep.subr.bf16.mxu0 %v688
    %952 = vmatpush1.bf16.msra.mxu0 %v687
    %953 = vmatprep.subr.bf16.mxu0 %v686
    %954 = vmatpush1.bf16.msra.mxu0 %v685
    %955 = vmatprep.subr.bf16.mxu0 %v684
    %956 = vmatpush1.bf16.msra.mxu0 %v683
    %957 = vmatprep.subr.bf16.mxu0 %v682
    %958 = vmatpush1.bf16.msra.mxu0 %v681
    %959 = vmatprep.subr.bf16.mxu0 %v680
    %960 = vmatpush1.bf16.msra.mxu0 %v679
    %961 = vmatprep.subr.bf16.mxu0 %v678
    %962 = vmatpush1.bf16.msra.mxu0 %v677
    %963 = vmatprep.subr.bf16.mxu0 %v676
    %964 = vmatpush1.bf16.msra.mxu0 %v675
    %965 = vmatprep.subr.bf16.mxu0 %v706
    %966 = vmatpush2.bf16.msra.mxu0 %v705
    %967 = vmatprep.subr.bf16.mxu0 %v704
    %968 = vmatpush2.bf16.msra.mxu0 %v703
    %969 = vmatprep.subr.bf16.mxu0 %v702
    %970 = vmatpush2.bf16.msra.mxu0 %v701
    %971 = vmatprep.subr.bf16.mxu0 %v700
    %972 = vmatpush2.bf16.msra.mxu0 %v699
    %973 = vmatprep.subr.bf16.mxu0 %v698
    %974 = vmatpush2.bf16.msra.mxu0 %v697
    %975 = vmatprep.subr.bf16.mxu0 %v696
    %976 = vmatpush2.bf16.msra.mxu0 %v695
    %977 = vmatprep.subr.bf16.mxu0 %v694
    %978 = vmatpush2.bf16.msra.mxu0 %v693
    %979 = vmatprep.subr.bf16.mxu0 %v692
    %980 = vmatpush2.bf16.msra.mxu0 %v691
    %981 = vmatprep.mubr.bf16.mxu0 %v84
    %982 = vmatmul.mubr.bf16.gmra.mxu0 %v83
    %v983 = vpop.f32.mrf.mxu0
    %v984 = vadd.f32 %v943, %v983
    %v985 = vpop.f32.mrf.mxu0
    %v986 = vadd.f32 %v945, %v985
    %v987 = vpop.f32.mrf.mxu0
    %v988 = vpop.f32.mrf.mxu0
    %989 = vdwg.mxu0
    %990 = vmatprep.subr.bf16.mxu0 %v722
    %991 = vmatpush1.bf16.msra.mxu0 %v721
    %992 = vmatprep.subr.bf16.mxu0 %v720
    %993 = vmatpush1.bf16.msra.mxu0 %v719
    %994 = vmatprep.subr.bf16.mxu0 %v718
    %995 = vmatpush1.bf16.msra.mxu0 %v717
    %996 = vmatprep.subr.bf16.mxu0 %v716
    %997 = vmatpush1.bf16.msra.mxu0 %v715
    %998 = vmatprep.subr.bf16.mxu0 %v714
    %999 = vmatpush1.bf16.msra.mxu0 %v713
    %1000 = vmatprep.subr.bf16.mxu0 %v712
    %1001 = vmatpush1.bf16.msra.mxu0 %v711
    %1002 = vmatprep.subr.bf16.mxu0 %v710
    %1003 = vmatpush1.bf16.msra.mxu0 %v709
    %1004 = vmatprep.subr.bf16.mxu0 %v708
    %1005 = vmatpush1.bf16.msra.mxu0 %v707
    %1006 = vmatprep.subr.bf16.mxu0 %v738
    %1007 = vmatpush2.bf16.msra.mxu0 %v737
    %1008 = vmatprep.subr.bf16.mxu0 %v736
    %1009 = vmatpush2.bf16.msra.mxu0 %v735
    %1010 = vmatprep.subr.bf16.mxu0 %v734
    %1011 = vmatpush2.bf16.msra.mxu0 %v733
    %1012 = vmatprep.subr.bf16.mxu0 %v732
    %1013 = vmatpush2.bf16.msra.mxu0 %v731
    %1014 = vmatprep.subr.bf16.mxu0 %v730
    %1015 = vmatpush2.bf16.msra.mxu0 %v729
    %1016 = vmatprep.subr.bf16.mxu0 %v728
    %1017 = vmatpush2.bf16.msra.mxu0 %v727
    %1018 = vmatprep.subr.bf16.mxu0 %v726
    %1019 = vmatpush2.bf16.msra.mxu0 %v725
    %1020 = vmatprep.subr.bf16.mxu0 %v724
    %1021 = vmatpush2.bf16.msra.mxu0 %v723
    %1022 = vmatprep.mubr.bf16.mxu0 %v86
    %1023 = vmatmul.mubr.bf16.gmra.mxu0 %v85
    %v1024 = vpop.f32.mrf.mxu0
    %v1025 = vadd.f32 %v984, %v1024
    %v1026 = vpop.f32.mrf.mxu0
    %v1027 = vadd.f32 %v986, %v1026
    %v1028 = vpop.f32.mrf.mxu0
    %v1029 = vpop.f32.mrf.mxu0
    %1030 = vdwg.mxu0
    %v1031 = vmax.f32 %v1025, 0.0
    %v1032 = vmax.f32 %v1027, 0.0
    %v1033 = vpack.c.bf16 %v1031, %v1031
    %v1034 = vpack.c.bf16 %v1032, %v1032
    %v1035 = vld [vmem:[%s2] sm:$0xf]
    %v1036 = vld [vmem:[%s2 + $0x4] sm:$0xf]
    %v1037 = vld [vmem:[%s2 + $0x8] sm:$0xf]
    %v1038 = vld [vmem:[%s2 + $0xc] sm:$0xf]
    %v1039 = vld [vmem:[%s2 + $0x10] sm:$0xf]
    %v1040 = vld [vmem:[%s2 + $0x14] sm:$0xf]
    %v1041 = vld [vmem:[%s2 + $0x18] sm:$0xf]
    %v1042 = vld [vmem:[%s2 + $0x1c] sm:$0xf]
    %v1043 = vld [vmem:[%s2 + $0x20] sm:$0xf]
    %v1044 = vld [vmem:[%s2 + $0x24] sm:$0xf]
    %v1045 = vld [vmem:[%s2 + $0x28] sm:$0xf]
    %v1046 = vld [vmem:[%s2 + $0x2c] sm:$0xf]
    %v1047 = vld [vmem:[%s2 + $0x30] sm:$0xf]
    %v1048 = vld [vmem:[%s2 + $0x34] sm:$0xf]
    %v1049 = vld [vmem:[%s2 + $0x38] sm:$0xf]
    %v1050 = vld [vmem:[%s2 + $0x3c] sm:$0xf]
    %v1051 = vld [vmem:[%s2 + $0x40] sm:$0xf]
    %v1052 = vld [vmem:[%s2 + $0x44] sm:$0xf]
    %v1053 = vld [vmem:[%s2 + $0x48] sm:$0xf]
    %v1054 = vld [vmem:[%s2 + $0x4c] sm:$0xf]
    %v1055 = vld [vmem:[%s2 + $0x50] sm:$0xf]
    %v1056 = vld [vmem:[%s2 + $0x54] sm:$0xf]
    %v1057 = vld [vmem:[%s2 + $0x58] sm:$0xf]
    %v1058 = vld [vmem:[%s2 + $0x5c] sm:$0xf]
    %v1059 = vld [vmem:[%s2 + $0x60] sm:$0xf]
    %v1060 = vld [vmem:[%s2 + $0x64] sm:$0xf]
    %v1061 = vld [vmem:[%s2 + $0x68] sm:$0xf]
    %v1062 = vld [vmem:[%s2 + $0x6c] sm:$0xf]
    %v1063 = vld [vmem:[%s2 + $0x70] sm:$0xf]
    %v1064 = vld [vmem:[%s2 + $0x74] sm:$0xf]
    %v1065 = vld [vmem:[%s2 + $0x78] sm:$0xf]
    %v1066 = vld [vmem:[%s2 + $0x7c] sm:$0xf]
    %v1067 = vld [vmem:[%s3 + $0x2] sm:$0x1]
    %v1069 = vlaneseq
    %v1070 = vshrl.u32 %v1069, 7
    %v1071 = vsub.s32 0, %v1070
    %v1072 = vrot.slane %v1067, %v1071
    %v1106 = vunpack.c.l.b16 %v1035
    %v1107 = vunpack.c.l.b16 %v1036
    %v1108 = vunpack.c.l.b16 %v1037
    %v1109 = vunpack.c.l.b16 %v1038
    %v1110 = vunpack.c.l.b16 %v1039
    %v1111 = vunpack.c.l.b16 %v1040
    %v1112 = vunpack.c.l.b16 %v1041
    %v1113 = vunpack.c.l.b16 %v1042
    %v1114 = vunpack.c.l.b16 %v1043
    %v1115 = vunpack.c.l.b16 %v1044
    %v1116 = vunpack.c.l.b16 %v1045
    %v1117 = vunpack.c.l.b16 %v1046
    %v1118 = vunpack.c.l.b16 %v1047
    %v1119 = vunpack.c.l.b16 %v1048
    %v1120 = vunpack.c.l.b16 %v1049
    %v1121 = vunpack.c.l.b16 %v1050
    %v1122 = vunpack.c.l.b16 %v1051
    %v1123 = vunpack.c.l.b16 %v1052
    %v1124 = vunpack.c.l.b16 %v1053
    %v1125 = vunpack.c.l.b16 %v1054
    %v1126 = vunpack.c.l.b16 %v1055
    %v1127 = vunpack.c.l.b16 %v1056
    %v1128 = vunpack.c.l.b16 %v1057
    %v1129 = vunpack.c.l.b16 %v1058
    %v1130 = vunpack.c.l.b16 %v1059
    %v1131 = vunpack.c.l.b16 %v1060
    %v1132 = vunpack.c.l.b16 %v1061
    %v1133 = vunpack.c.l.b16 %v1062
    %v1134 = vunpack.c.l.b16 %v1063
    %v1135 = vunpack.c.l.b16 %v1064
    %v1136 = vunpack.c.l.b16 %v1065
    %v1137 = vunpack.c.l.b16 %v1066
    %v1138 = vpack.c.b16 %v1107, %v1106
    %v1139 = vpack.c.b16 %v1109, %v1108
    %v1140 = vpack.c.b16 %v1111, %v1110
    %v1141 = vpack.c.b16 %v1113, %v1112
    %v1142 = vpack.c.b16 %v1115, %v1114
    %v1143 = vpack.c.b16 %v1117, %v1116
    %v1144 = vpack.c.b16 %v1119, %v1118
    %v1145 = vpack.c.b16 %v1121, %v1120
    %v1146 = vpack.c.b16 %v1123, %v1122
    %v1147 = vpack.c.b16 %v1125, %v1124
    %v1148 = vpack.c.b16 %v1127, %v1126
    %v1149 = vpack.c.b16 %v1129, %v1128
    %v1150 = vpack.c.b16 %v1131, %v1130
    %v1151 = vpack.c.b16 %v1133, %v1132
    %v1152 = vpack.c.b16 %v1135, %v1134
    %v1153 = vpack.c.b16 %v1137, %v1136
    %1170 = vmatprep.subr.bf16.mxu0 0
    %1171 = vmatpush1.bf16.msra.mxu0 %v1145
    %1172 = vmatprep.subr.bf16.mxu0 0
    %1173 = vmatpush1.bf16.msra.mxu0 %v1144
    %1174 = vmatprep.subr.bf16.mxu0 0
    %1175 = vmatpush1.bf16.msra.mxu0 %v1143
    %1176 = vmatprep.subr.bf16.mxu0 0
    %1177 = vmatpush1.bf16.msra.mxu0 %v1142
    %1178 = vmatprep.subr.bf16.mxu0 0
    %1179 = vmatpush1.bf16.msra.mxu0 %v1141
    %1180 = vmatprep.subr.bf16.mxu0 0
    %1181 = vmatpush1.bf16.msra.mxu0 %v1140
    %1182 = vmatprep.subr.bf16.mxu0 0
    %1183 = vmatpush1.bf16.msra.mxu0 %v1139
    %1184 = vmatprep.subr.bf16.mxu0 0
    %1185 = vmatpush1.bf16.msra.mxu0 %v1138
    %1186 = vmatprep.subr.bf16.mxu0 0
    %1187 = vmatpush2.bf16.msra.mxu0 %v1153
    %1188 = vmatprep.subr.bf16.mxu0 0
    %1189 = vmatpush2.bf16.msra.mxu0 %v1152
    %1190 = vmatprep.subr.bf16.mxu0 0
    %1191 = vmatpush2.bf16.msra.mxu0 %v1151
    %1192 = vmatprep.subr.bf16.mxu0 0
    %1193 = vmatpush2.bf16.msra.mxu0 %v1150
    %1194 = vmatprep.subr.bf16.mxu0 0
    %1195 = vmatpush2.bf16.msra.mxu0 %v1149
    %1196 = vmatprep.subr.bf16.mxu0 0
    %1197 = vmatpush2.bf16.msra.mxu0 %v1148
    %1198 = vmatprep.subr.bf16.mxu0 0
    %1199 = vmatpush2.bf16.msra.mxu0 %v1147
    %1200 = vmatprep.subr.bf16.mxu0 0
    %1201 = vmatpush2.bf16.msra.mxu0 %v1146
    %1202 = vmatprep.mubr.bf16.mxu0 %v1034
    %1203 = vmatmul.mubr.bf16.gmra.mxu0 %v1033
    %v1204 = vpop.f32.mrf.mxu0
    %v1205 = vadd.f32 %v1072, %v1204
    %v1206 = vpop.f32.mrf.mxu0
    %v1207 = vpop.f32.mrf.mxu0
    %v1208 = vpop.f32.mrf.mxu0
    %1209 = vdwg.mxu0
    %1210 = vst [vmem:[#allocation5] sm:$0x3] %v1205
    // Predicated region
    $region22: #{model_fn.1} parent=1 // pred_check
      _
    $region23: #{model_fn.1} parent=1 // pred_check_branch
      %1212 = sbr.rel (0) target = $region25
    $region24: #{model_fn.1} parent=1 // pred_region
      %s1214 = ssub.s32 32, 32
      %1215 = vsyncadd [#allocation4], %s1214
      %s1217 = sshll.u32 [#allocation5], 4
      %s1218 = int_to_ptr.vmem [resolvable:$true] %s1217
      %1220 = dma.vmem_to_hbm [thread:$0]  %s1218, 32, %s4, [#allocation4]
    $region25: #{model_fn.1} parent=1 // pred_fallthru
      _
    // Predicated region
    $region26: #{model_fn.1} parent=1 // pred_check
      _
    $region27: #{model_fn.1} parent=1 // pred_check_branch
      %1222 = sbr.rel (0) target = $region29
    $region28: #{model_fn.1} parent=1 // pred_region
      %1223 = dma.done [#allocation4], 32
    $region29: #{model_fn.1} parent=1 // pred_fallthru
      _
    %1224 = vsyncpa [#allocation3], 1
    %1225 = vsyncpa [#allocation4], 1

</llo_original>
